<compile_context>
chip_gen: v5e
topology: v5e:2x2
jax: 0.10.0
libtpu: 0.0.40
codegen_flags: <defaults>
</compile_context>

<pallas_src>
import math

import jax
import jax.numpy as jnp
from jax.experimental import pallas as pl
from jax.experimental.pallas import tpu as pltpu


def _round_up(x, m):
    return -(-x // m) * m


def _gating_char_fuser_kernel(word_ref, char_ref, ww_ref, bw_ref,
                              wc_ref, bc_ref, wg_ref, bg_ref, out_ref):
    """One row-tile of the fused gate/proj/mix computation.

    word_ref : VMEM (tile, word_dim)     native dtype
    char_ref : VMEM (tile, char_dim)     native dtype
    ww_ref   : VMEM (word_dim, out_pad)  native dtype (MXU operand)
    bw_ref   : VMEM (1, out_pad)         f32 (pre-cast in wrapper)
    wc_ref   : VMEM (char_dim, out_pad)  native dtype (MXU operand)
    bc_ref   : VMEM (1, out_pad)         f32
    wg_ref   : VMEM (1, word_dim)        f32 (gate weight row)
    bg_ref   : SMEM (1,)                 f32 gate bias scalar
    out_ref  : VMEM (tile, out_pad)
    """
    word = word_ref[...]                               # (tile, word_dim)
    char = char_ref[...]                               # (tile, char_dim)

    # Gate logit via VPU multiply + cross-lane (XLU) reduce; rides slots the
    # matmuls don't use, so it is effectively free at these shapes.
    g_logit = jnp.sum(word.astype(jnp.float32) * wg_ref[...], axis=-1,
                      keepdims=True) + bg_ref[0]       # (tile, 1) f32
    g = jax.nn.sigmoid(g_logit)

    # Two projections on the MXU with native-dtype operands, f32 accumulation,
    # tanh on the EUP. Bias adds and mixing stay in f32.
    w = jnp.tanh(
        jnp.dot(word, ww_ref[...], preferred_element_type=jnp.float32)
        + bw_ref[...])
    c = jnp.tanh(
        jnp.dot(char, wc_ref[...], preferred_element_type=jnp.float32)
        + bc_ref[...])

    out_ref[...] = (g * w + (1.0 - g) * c).astype(out_ref.dtype)


def gating_char_fuser_forward(word_emb, char_emb, params, *, tm=1024):
    """word_emb: (..., word_dim), char_emb: (..., char_dim) with identical
    leading dims. Returns (..., output_dim)."""
    ww, bw = params["ww"], params["bw"]      # (word_dim, output_dim), (output_dim,)
    wc, bc = params["wc"], params["bc"]      # (char_dim, output_dim), (output_dim,)
    wg, bg = params["wg"], params["bg"]      # (word_dim,), (1,)

    word_dim, output_dim = ww.shape
    char_dim = wc.shape[0]
    lead_shape = word_emb.shape[:-1]
    n = int(math.prod(lead_shape)) if lead_shape else 1

    word2d = word_emb.reshape(n, word_dim)
    char2d = char_emb.reshape(n, char_dim)

    itemsize = jnp.dtype(word_emb.dtype).itemsize
    sub = {4: 8, 2: 16, 1: 32}.get(itemsize, 8)   # sublane multiple for dtype

    # --- Lane-dense output guard: pad weight columns up to a multiple of 128
    # (one-time, tiny) so output stores are unmasked vst; slice at the end.
    out_pad = _round_up(output_dim, 128)
    if out_pad != output_dim:
        pad_c = out_pad - output_dim
        ww = jnp.pad(ww, ((0, 0), (0, pad_c)))
        wc = jnp.pad(wc, ((0, 0), (0, pad_c)))
        bw = jnp.pad(bw, ((0, pad_c),))
        bc = jnp.pad(bc, ((0, pad_c),))

    # --- Row tile selection: big tiles for throughput, but at least 2 grid
    # steps when possible so v7x's second TensorCore gets work. No activation
    # padding: the ragged last tile is handled by boundary-block clipping.
    if n <= sub:
        tile = n
    else:
        target = max(sub, _round_up(pl.cdiv(n, 2), sub))
        tile = min(tm, target)
    grid = (pl.cdiv(n, tile),)

    # --- Hoisted parameter dtype/layout plumbing (runs once, not per step).
    wg2d = wg.reshape(1, word_dim).astype(jnp.float32)
    bw2d = bw.reshape(1, out_pad).astype(jnp.float32)
    bc2d = bc.reshape(1, out_pad).astype(jnp.float32)
    bg1 = bg.reshape(1).astype(jnp.float32)

    # --- VMEM budget (double-buffered streaming operands are lane-padded to
    # 128); set an explicit limit only if it would overshoot the conservative
    # v5e 16 MiB scoped default.
    lane = 128
    vmem_bytes = (
        2 * tile * _round_up(word_dim, lane) * itemsize       # word (2 bufs)
        + 2 * tile * _round_up(char_dim, lane) * itemsize     # char (2 bufs)
        + 2 * tile * out_pad * itemsize                        # out  (2 bufs)
        + (word_dim + char_dim) * out_pad * itemsize           # resident weights
        + 4 * (2 * out_pad + word_dim + 8)                     # f32 biases/gate
    )
    compiler_kwargs = dict(dimension_semantics=("parallel",))
    if vmem_bytes > 12 * 1024 * 1024:
        compiler_kwargs["vmem_limit_bytes"] = min(
            int(vmem_bytes) + (4 << 20), 100 * 1024 * 1024)

    flops = (2 * n * out_pad * (word_dim + char_dim)   # two matmuls
             + 2 * n * word_dim                        # gate reduce
             + 6 * n * out_pad)                        # bias adds + mix
    transcendentals = n * (2 * out_pad + 1)            # 2 tanh rows + 1 sigmoid
    bytes_accessed = (
        itemsize * n * (word_dim + char_dim + out_pad)
        + itemsize * (word_dim + char_dim) * out_pad
        + 4 * (word_dim + 2 * out_pad + 1))

    out2d = pl.pallas_call(
        _gating_char_fuser_kernel,
        out_shape=jax.ShapeDtypeStruct((n, out_pad), word_emb.dtype),
        grid_spec=pltpu.PrefetchScalarGridSpec(
            num_scalar_prefetch=0,
            grid=grid,
            in_specs=[
                pl.BlockSpec((tile, word_dim), lambda i: (i, 0)),
                pl.BlockSpec((tile, char_dim), lambda i: (i, 0)),
                pl.BlockSpec((word_dim, out_pad), lambda i: (0, 0)),
                pl.BlockSpec((1, out_pad), lambda i: (0, 0)),
                pl.BlockSpec((char_dim, out_pad), lambda i: (0, 0)),
                pl.BlockSpec((1, out_pad), lambda i: (0, 0)),
                pl.BlockSpec((1, word_dim), lambda i: (0, 0)),
                pl.BlockSpec(memory_space=pltpu.MemorySpace.SMEM),
            ],
            out_specs=pl.BlockSpec((tile, out_pad), lambda i: (i, 0)),
        ),
        compiler_params=pltpu.CompilerParams(**compiler_kwargs),
        cost_estimate=pl.CostEstimate(
            flops=int(flops),
            transcendentals=int(transcendentals),
            bytes_accessed=int(bytes_accessed),
        ),
    )(word2d, char2d, ww, bw2d, wc, bc2d, wg2d, bg1)

    if out_pad != output_dim:
        out2d = out2d[:, :output_dim]
    return out2d.reshape(*lead_shape, output_dim)


def gating_char_fuser_ref(word_emb, char_emb, params):
    """Pure-JAX reference matching the PyTorch forward."""
    g = jax.nn.sigmoid(word_emb @ params["wg"][:, None] + params["bg"])
    w = jnp.tanh(word_emb @ params["ww"] + params["bw"])
    c = jnp.tanh(char_emb @ params["wc"] + params["bc"])
    return g * w + (1.0 - g) * c


if __name__ == "__main__":
    # Small shapes consistent with the module's forward.
    batch, seq = 2, 8
    word_dim, char_dim, output_dim = 32, 24, 128

    key = jax.random.PRNGKey(0)
    ks = jax.random.split(key, 8)

    word_emb = jax.random.normal(ks[0], (batch, seq, word_dim), dtype=jnp.float32)
    char_emb = jax.random.normal(ks[1], (batch, seq, char_dim), dtype=jnp.float32)

    params = {
        "ww": 0.1 * jax.random.normal(ks[2], (word_dim, output_dim), jnp.float32),
        "bw": 0.1 * jax.random.normal(ks[3], (output_dim,), jnp.float32),
        "wc": 0.1 * jax.random.normal(ks[4], (char_dim, output_dim), jnp.float32),
        "bc": 0.1 * jax.random.normal(ks[5], (output_dim,), jnp.float32),
        "wg": 0.1 * jax.random.normal(ks[6], (word_dim,), jnp.float32),
        "bg": 0.1 * jax.random.normal(ks[7], (1,), jnp.float32),
    }

    out = gating_char_fuser_forward(word_emb, char_emb, params)
    out = jax.block_until_ready(out)

    ref = gating_char_fuser_ref(word_emb, char_emb, params)
    assert out.shape == (batch, seq, output_dim)
    assert jnp.allclose(out, ref, atol=5e-5, rtol=5e-5), float(
        jnp.max(jnp.abs(out - ref)))

    print("KERNEL_OK")
</pallas_src>

<mosaic_0001>
module attributes {stable_mosaic.version = 11 : i64} {
  func.func @_gating_char_fuser_kernel(%arg0: i32, %arg1: memref<8x32xf32, #tpu.memory_space<vmem>>, %arg2: memref<8x24xf32, #tpu.memory_space<vmem>>, %arg3: memref<32x128xf32, #tpu.memory_space<vmem>>, %arg4: memref<1x128xf32, #tpu.memory_space<vmem>>, %arg5: memref<24x128xf32, #tpu.memory_space<vmem>>, %arg6: memref<1x128xf32, #tpu.memory_space<vmem>>, %arg7: memref<1x32xf32, #tpu.memory_space<vmem>>, %arg8: memref<1xf32, #tpu.memory_space<smem>>, %arg9: memref<8x128xf32, #tpu.memory_space<vmem>>) attributes {dimension_semantics = [#tpu.dimension_semantics<parallel>], iteration_bounds = array<i64: 2>, scalar_prefetch = 0 : i64, scratch_operands = 0 : i64, tpu.core_type = #tpu.core_type<tc>, window_params = [{transform_indices = @transform_0, window_bounds = array<i64: 8, 32>}, {transform_indices = @transform_1, window_bounds = array<i64: 8, 24>}, {pipeline_mode = #tpu.pipeline_mode<synchronous>, transform_indices = @transform_2, window_bounds = array<i64: 32, 128>}, {pipeline_mode = #tpu.pipeline_mode<synchronous>, transform_indices = @transform_3, window_bounds = array<i64: 1, 128>}, {pipeline_mode = #tpu.pipeline_mode<synchronous>, transform_indices = @transform_4, window_bounds = array<i64: 24, 128>}, {pipeline_mode = #tpu.pipeline_mode<synchronous>, transform_indices = @transform_5, window_bounds = array<i64: 1, 128>}, {pipeline_mode = #tpu.pipeline_mode<synchronous>, transform_indices = @transform_6, window_bounds = array<i64: 1, 32>}, {transform_indices = @transform_7, window_bounds = array<i64: 1>}, {transform_indices = @transform_8, window_bounds = array<i64: 8, 128>}]} {
    %c0 = arith.constant 0 : index
    %c0_0 = arith.constant 0 : index
    %0 = vector.load %arg1[%c0, %c0_0] : memref<8x32xf32, #tpu.memory_space<vmem>>, vector<8x32xf32>
    %c0_1 = arith.constant 0 : index
    %c0_2 = arith.constant 0 : index
    %1 = vector.load %arg2[%c0_1, %c0_2] : memref<8x24xf32, #tpu.memory_space<vmem>>, vector<8x24xf32>
    %c0_3 = arith.constant 0 : index
    %c0_4 = arith.constant 0 : index
    %2 = vector.load %arg7[%c0_3, %c0_4] : memref<1x32xf32, #tpu.memory_space<vmem>>, vector<1x32xf32>
    %3 = vector.broadcast %2 : vector<1x32xf32> to vector<8x32xf32>
    %4 = arith.mulf %0, %3 : vector<8x32xf32>
    %cst = arith.constant dense<0.000000e+00> : vector<8xf32>
    %5 = vector.multi_reduction <add>, %4, %cst [1] : vector<8x32xf32> to vector<8xf32>
    %6 = vector.shape_cast %5 : vector<8xf32> to vector<8x1xf32>
    %c0_5 = arith.constant 0 : index
    %7 = memref.load %arg8[%c0_5] : memref<1xf32, #tpu.memory_space<smem>>
    %8 = vector.broadcast %7 : f32 to vector<8x1xf32>
    %9 = arith.addf %6, %8 : vector<8x1xf32>
    %10 = arith.negf %9 : vector<8x1xf32>
    %11 = math.exp %10 : vector<8x1xf32>
    %cst_6 = arith.constant 1.000000e+00 : f32
    %12 = vector.broadcast %cst_6 : f32 to vector<8x1xf32>
    %13 = arith.addf %12, %11 : vector<8x1xf32>
    %14 = arith.divf %12, %13 : vector<8x1xf32>
    %c0_7 = arith.constant 0 : index
    %c0_8 = arith.constant 0 : index
    %15 = vector.load %arg3[%c0_7, %c0_8] : memref<32x128xf32, #tpu.memory_space<vmem>>, vector<32x128xf32>
    %cst_9 = arith.constant dense<0.000000e+00> : vector<8x128xf32>
    %16 = tpu.matmul %0, %15, %cst_9 {dimension_numbers = #tpu.dot_dimension_numbers<[1], [0], [0], [1], [0, 0, 1, 1], [], []>} : vector<8x32xf32>, vector<32x128xf32>, vector<8x128xf32> -> vector<8x128xf32>
    %c0_10 = arith.constant 0 : index
    %c0_11 = arith.constant 0 : index
    %17 = vector.load %arg4[%c0_10, %c0_11] : memref<1x128xf32, #tpu.memory_space<vmem>>, vector<1x128xf32>
    %18 = vector.broadcast %17 : vector<1x128xf32> to vector<8x128xf32>
    %19 = arith.addf %16, %18 : vector<8x128xf32>
    %20 = math.tanh %19 : vector<8x128xf32>
    %c0_12 = arith.constant 0 : index
    %c0_13 = arith.constant 0 : index
    %21 = vector.load %arg5[%c0_12, %c0_13] : memref<24x128xf32, #tpu.memory_space<vmem>>, vector<24x128xf32>
    %cst_14 = arith.constant dense<0.000000e+00> : vector<8x128xf32>
    %22 = tpu.matmul %1, %21, %cst_14 {dimension_numbers = #tpu.dot_dimension_numbers<[1], [0], [0], [1], [0, 0, 1, 1], [], []>} : vector<8x24xf32>, vector<24x128xf32>, vector<8x128xf32> -> vector<8x128xf32>
    %c0_15 = arith.constant 0 : index
    %c0_16 = arith.constant 0 : index
    %23 = vector.load %arg6[%c0_15, %c0_16] : memref<1x128xf32, #tpu.memory_space<vmem>>, vector<1x128xf32>
    %24 = vector.broadcast %23 : vector<1x128xf32> to vector<8x128xf32>
    %25 = arith.addf %22, %24 : vector<8x128xf32>
    %26 = math.tanh %25 : vector<8x128xf32>
    %27 = vector.broadcast %14 : vector<8x1xf32> to vector<8x128xf32>
    %28 = arith.mulf %27, %20 : vector<8x128xf32>
    %cst_17 = arith.constant 1.000000e+00 : f32
    %29 = vector.broadcast %cst_17 : f32 to vector<8x1xf32>
    %30 = arith.subf %29, %14 : vector<8x1xf32>
    %31 = vector.broadcast %30 : vector<8x1xf32> to vector<8x128xf32>
    %32 = arith.mulf %31, %26 : vector<8x128xf32>
    %33 = arith.addf %28, %32 : vector<8x128xf32>
    %c0_18 = arith.constant 0 : index
    %c0_19 = arith.constant 0 : index
    %34 = vector.load %arg9[%c0_18, %c0_19] : memref<8x128xf32, #tpu.memory_space<vmem>>, vector<8x128xf32>
    tpu.vector_store %arg9[%c0_18, %c0_19], %33 {strides = array<i32>} : memref<8x128xf32, #tpu.memory_space<vmem>>, vector<8x128xf32>,
    return
  }
  func.func @transform_0(%arg0: i32) -> (i32, i32) {
    %c0_i32 = arith.constant 0 : i32
    %c0_i32_0 = arith.constant 0 : i32
    return %arg0, %c0_i32 : i32, i32
  }
  func.func @transform_1(%arg0: i32) -> (i32, i32) {
    %c0_i32 = arith.constant 0 : i32
    %c0_i32_0 = arith.constant 0 : i32
    return %arg0, %c0_i32 : i32, i32
  }
  func.func @transform_2(%arg0: i32) -> (i32, i32) {
    %c0_i32 = arith.constant 0 : i32
    %c0_i32_0 = arith.constant 0 : i32
    %c0_i32_1 = arith.constant 0 : i32
    return %c0_i32, %c0_i32_0 : i32, i32
  }
  func.func @transform_3(%arg0: i32) -> (i32, i32) {
    %c0_i32 = arith.constant 0 : i32
    %c0_i32_0 = arith.constant 0 : i32
    %c0_i32_1 = arith.constant 0 : i32
    return %c0_i32, %c0_i32_0 : i32, i32
  }
  func.func @transform_4(%arg0: i32) -> (i32, i32) {
    %c0_i32 = arith.constant 0 : i32
    %c0_i32_0 = arith.constant 0 : i32
    %c0_i32_1 = arith.constant 0 : i32
    return %c0_i32, %c0_i32_0 : i32, i32
  }
  func.func @transform_5(%arg0: i32) -> (i32, i32) {
    %c0_i32 = arith.constant 0 : i32
    %c0_i32_0 = arith.constant 0 : i32
    %c0_i32_1 = arith.constant 0 : i32
    return %c0_i32, %c0_i32_0 : i32, i32
  }
  func.func @transform_6(%arg0: i32) -> (i32, i32) {
    %c0_i32 = arith.constant 0 : i32
    %c0_i32_0 = arith.constant 0 : i32
    %c0_i32_1 = arith.constant 0 : i32
    return %c0_i32, %c0_i32_0 : i32, i32
  }
  func.func @transform_7(%arg0: i32) -> i32 {
    %c0_i32 = arith.constant 0 : i32
    %c0_i32_0 = arith.constant 0 : i32
    return %c0_i32 : i32
  }
  func.func @transform_8(%arg0: i32) -> (i32, i32) {
    %c0_i32 = arith.constant 0 : i32
    %c0_i32_0 = arith.constant 0 : i32
    return %arg0, %c0_i32 : i32, i32
  }
}

</mosaic_0001>

<llo_original>
// kernel: tpu_custom_call.1
$region0: #{tpu_custom_call.1}
  #allocation0 [shape = 'u32[]', space=smem, size = 0x4, offset = 0x4, fixed_abs, tag = 'smem constant byte address 0x4 - core index']
  #allocation1 [shape = 'u32[72,128]{1,0:T(1,128)}', space=vmem, size = 0x9000, scoped, tag = 'internal scratch']
  #allocation2 [shape = 'f32[1]{0:T(128)S(6)}', space=smem, size = 0x200, scoped, tag = 'scoped memory for tpu_custom_call.1']
  %s0 = inlined_call_operand.hbm [shape: f32[16,32], index: 0, kind: input, shape index: {}]
  %s1 = inlined_call_operand.hbm [shape: f32[16,24], index: 1, kind: input, shape index: {}]
  %s2 = inlined_call_operand.hbm [shape: f32[32,128], index: 2, kind: input, shape index: {}]
  %s3 = inlined_call_operand.vmem [shape: f32[1,128], index: 3, kind: input, shape index: {}]
  %s4 = inlined_call_operand.hbm [shape: f32[24,128], index: 4, kind: input, shape index: {}]
  %s5 = inlined_call_operand.vmem [shape: f32[1,128], index: 5, kind: input, shape index: {}]
  %s6 = inlined_call_operand.vmem [shape: f32[1,32], index: 6, kind: input, shape index: {}]
  %s7 = inlined_call_operand.<no memory space> [shape: f32[1], index: 7, kind: input, shape index: {}]
  %s8 = inlined_call_operand.hbm [shape: f32[16,128], index: 8, kind: output, shape index: {}]
  %s9 = sld [smem:[#allocation0]]
  $region81: #{tpu_custom_call.1} parent=0
    _
  %s11 = ssub.s32 1, %s9
  %s12 = scalar_select 0, %s11, %s9
  %13 = sst [smem:[#allocation2]] %s7
  $region1: #{tpu_custom_call.1} parent=0
    #allocation3 [shape = 'u8[8192]{0}', space=vmem, size = 0x2000, scoped, tag = 'input window, operand 0']
    #allocation4 [shape = 's32[2]{0}', space=sflag, size = 0x8, scoped, tag = 'scoped memory for tpu_custom_call.1']
    #allocation5 [shape = 's32[2]{0}', space=sflag, size = 0x8, scoped, tag = 'scoped memory for tpu_custom_call.1']
    #allocation6 [shape = 'u8[8192]{0}', space=vmem, size = 0x2000, scoped, tag = 'input window, operand 1']
    #allocation7 [shape = 's32[2]{0}', space=sflag, size = 0x8, scoped, tag = 'scoped memory for tpu_custom_call.1']
    #allocation8 [shape = 'u8[16384]{0}', space=vmem, size = 0x4000, scoped, tag = 'input window, operand 2, single buffered']
    #allocation9 [shape = 'u8[12288]{0}', space=vmem, size = 0x3000, scoped, tag = 'input window, operand 4, single buffered']
    #allocation10 [shape = 's32[1]{0}', space=sflag, size = 0x4, scoped, tag = 'scoped memory for tpu_custom_call.1']
    #allocation11 [shape = 'u8[8192]{0}', space=vmem, size = 0x2000, scoped, tag = 'output window, operand 0']
    %14 = vsyncpa [#allocation4], 0
    %s15 = scalar_lea.sflag [#allocation4], 1
    %16 = vsyncpa %s15, 0
    %17 = vsyncpa [#allocation7], 0
    %s18 = scalar_lea.sflag [#allocation7], 1
    %19 = vsyncpa %s18, 0
    %20 = vsyncpa [#allocation10], 0
    %21 = vsyncpa [#allocation5], 0
    %s22 = scalar_lea.sflag [#allocation5], 1
    %23 = vsyncpa %s22, 0
    loop: start=0, step=1, limit=4
    $region2: #{tpu_custom_call.1} parent=1 // loop_pre_header
      _
    $region3: #{tpu_custom_call.1} parent=1 // loop_header
      %s25 = sphi 0, %s29
      %p26 = scmp.ge.s32.totalorder %s25, 4
      %s35 = sphi 0, %s37
      %s38 = sphi 0, %s35
      %s39 = sphi 0, %s38
      %s55 = sphi 0, %s39
      %s61 = sphi 0, %s63
      %s64 = sphi 0, %s61
      %s65 = sphi 0, %s64
      %s81 = sphi 0, %s65
      %s85 = sphi 0, %s85
      %s87 = sphi 0, %s85
      %s88 = sphi 0, %s87
      %s102 = sphi 0, %s88
      %s106 = sphi 0, %s106
      %s108 = sphi 0, %s106
      %s109 = sphi 0, %s108
      %s123 = sphi 0, %s109
      %s127 = sphi 0, %s127
      %s129 = sphi 0, %s127
      %s130 = sphi 0, %s129
      %s144 = sphi 0, %s130
      %s148 = sphi 0, %s148
      %s150 = sphi 0, %s148
      %s151 = sphi 0, %s150
      %s165 = sphi 0, %s151
      %s169 = sphi 0, %s169
      %s171 = sphi 0, %s169
      %s172 = sphi 0, %s171
      %s186 = sphi 0, %s172
      %s190 = sphi 0, %s190
      %s192 = sphi 0, %s190
      %s193 = sphi 0, %s192
      %s207 = sphi 0, %s193
      %s213 = sphi 0, %s215
      %s216 = sphi 0, %s213
      %s217 = sphi 0, %s216
      %s233 = sphi 0, %s217
    $region4: #{tpu_custom_call.1} parent=1 // loop_header_branch
      %28 = sbr.rel (%p26) target = $region8
    $region5: #{tpu_custom_call.1} parent=1 // loop_body
      %s30 = ssub.s32 %s25, 1
      %s31 = ssub.s32 %s25, 2
      %s32 = sadd.s32 %s25, 1
      %s33 = ssub.s32 %s25, %s32
      %p34 = scmp.eq.s32.totalorder %s33, 0
      %s36 = sadd.s32 %s35, 1
      %s37 = scalar_select %p34, %s35, %s36
      %p40 = pneg %p34
      %p41 = scmp.eq.s32.totalorder %s25, 1
      %p42 = por %p40, %p41
      %p43 = scmp.ne.s32.totalorder %s35, %s38
      %p44 = scmp.eq.s32.totalorder %s25, 0
      %p45 = por %p43, %p44
      %p46 = scmp.ne.s32.totalorder %s35, %s38
      %p47 = scmp.eq.s32.totalorder %s30, 1
      %p48 = por %p46, %p47
      %p49 = scmp.ne.s32.totalorder %s38, %s39
      %p50 = scmp.eq.s32.totalorder %s30, 0
      %p51 = por %p49, %p50
      %p52 = scmp.ne.s32.totalorder %s38, %s39
      %p53 = scmp.eq.s32.totalorder %s31, 1
      %p54 = por %p52, %p53
      %p56 = scmp.ne.s32.totalorder %s39, %s55
      %p57 = scmp.eq.s32.totalorder %s31, 0
      %p58 = por %p56, %p57
      %s59 = ssub.s32 %s25, %s32
      %p60 = scmp.eq.s32.totalorder %s59, 0
      %s62 = sadd.s32 %s61, 1
      %s63 = scalar_select %p60, %s61, %s62
      %p66 = pneg %p60
      %p67 = scmp.eq.s32.totalorder %s25, 1
      %p68 = por %p66, %p67
      %p69 = scmp.ne.s32.totalorder %s61, %s64
      %p70 = scmp.eq.s32.totalorder %s25, 0
      %p71 = por %p69, %p70
      %p72 = scmp.ne.s32.totalorder %s61, %s64
      %p73 = scmp.eq.s32.totalorder %s30, 1
      %p74 = por %p72, %p73
      %p75 = scmp.ne.s32.totalorder %s64, %s65
      %p76 = scmp.eq.s32.totalorder %s30, 0
      %p77 = por %p75, %p76
      %p78 = scmp.ne.s32.totalorder %s64, %s65
      %p79 = scmp.eq.s32.totalorder %s31, 1
      %p80 = por %p78, %p79
      %p82 = scmp.ne.s32.totalorder %s65, %s81
      %p83 = scmp.eq.s32.totalorder %s31, 0
      %p84 = por %p82, %p83
      %s86 = sadd.s32 %s85, 1
      %p89 = scmp.eq.s32.totalorder %s25, 1
      %p90 = scmp.ne.s32.totalorder %s85, %s87
      %p91 = scmp.eq.s32.totalorder %s25, 0
      %p92 = por %p90, %p91
      %p93 = scmp.ne.s32.totalorder %s85, %s87
      %p94 = scmp.eq.s32.totalorder %s30, 1
      %p95 = por %p93, %p94
      %p96 = scmp.ne.s32.totalorder %s87, %s88
      %p97 = scmp.eq.s32.totalorder %s30, 0
      %p98 = por %p96, %p97
      %p99 = scmp.ne.s32.totalorder %s87, %s88
      %p100 = scmp.eq.s32.totalorder %s31, 1
      %p101 = por %p99, %p100
      %p103 = scmp.ne.s32.totalorder %s88, %s102
      %p104 = scmp.eq.s32.totalorder %s31, 0
      %p105 = por %p103, %p104
      %s107 = sadd.s32 %s106, 1
      %p110 = scmp.eq.s32.totalorder %s25, 1
      %p111 = scmp.ne.s32.totalorder %s106, %s108
      %p112 = scmp.eq.s32.totalorder %s25, 0
      %p113 = por %p111, %p112
      %p114 = scmp.ne.s32.totalorder %s106, %s108
      %p115 = scmp.eq.s32.totalorder %s30, 1
      %p116 = por %p114, %p115
      %p117 = scmp.ne.s32.totalorder %s108, %s109
      %p118 = scmp.eq.s32.totalorder %s30, 0
      %p119 = por %p117, %p118
      %p120 = scmp.ne.s32.totalorder %s108, %s109
      %p121 = scmp.eq.s32.totalorder %s31, 1
      %p122 = por %p120, %p121
      %p124 = scmp.ne.s32.totalorder %s109, %s123
      %p125 = scmp.eq.s32.totalorder %s31, 0
      %p126 = por %p124, %p125
      %s128 = sadd.s32 %s127, 1
      %p131 = scmp.eq.s32.totalorder %s25, 1
      %p132 = scmp.ne.s32.totalorder %s127, %s129
      %p133 = scmp.eq.s32.totalorder %s25, 0
      %p134 = por %p132, %p133
      %p135 = scmp.ne.s32.totalorder %s127, %s129
      %p136 = scmp.eq.s32.totalorder %s30, 1
      %p137 = por %p135, %p136
      %p138 = scmp.ne.s32.totalorder %s129, %s130
      %p139 = scmp.eq.s32.totalorder %s30, 0
      %p140 = por %p138, %p139
      %p141 = scmp.ne.s32.totalorder %s129, %s130
      %p142 = scmp.eq.s32.totalorder %s31, 1
      %p143 = por %p141, %p142
      %p145 = scmp.ne.s32.totalorder %s130, %s144
      %p146 = scmp.eq.s32.totalorder %s31, 0
      %p147 = por %p145, %p146
      %s149 = sadd.s32 %s148, 1
      %p152 = scmp.eq.s32.totalorder %s25, 1
      %p153 = scmp.ne.s32.totalorder %s148, %s150
      %p154 = scmp.eq.s32.totalorder %s25, 0
      %p155 = por %p153, %p154
      %p156 = scmp.ne.s32.totalorder %s148, %s150
      %p157 = scmp.eq.s32.totalorder %s30, 1
      %p158 = por %p156, %p157
      %p159 = scmp.ne.s32.totalorder %s150, %s151
      %p160 = scmp.eq.s32.totalorder %s30, 0
      %p161 = por %p159, %p160
      %p162 = scmp.ne.s32.totalorder %s150, %s151
      %p163 = scmp.eq.s32.totalorder %s31, 1
      %p164 = por %p162, %p163
      %p166 = scmp.ne.s32.totalorder %s151, %s165
      %p167 = scmp.eq.s32.totalorder %s31, 0
      %p168 = por %p166, %p167
      %s170 = sadd.s32 %s169, 1
      %p173 = scmp.eq.s32.totalorder %s25, 1
      %p174 = scmp.ne.s32.totalorder %s169, %s171
      %p175 = scmp.eq.s32.totalorder %s25, 0
      %p176 = por %p174, %p175
      %p177 = scmp.ne.s32.totalorder %s169, %s171
      %p178 = scmp.eq.s32.totalorder %s30, 1
      %p179 = por %p177, %p178
      %p180 = scmp.ne.s32.totalorder %s171, %s172
      %p181 = scmp.eq.s32.totalorder %s30, 0
      %p182 = por %p180, %p181
      %p183 = scmp.ne.s32.totalorder %s171, %s172
      %p184 = scmp.eq.s32.totalorder %s31, 1
      %p185 = por %p183, %p184
      %p187 = scmp.ne.s32.totalorder %s172, %s186
      %p188 = scmp.eq.s32.totalorder %s31, 0
      %p189 = por %p187, %p188
      %s191 = sadd.s32 %s190, 1
      %p194 = scmp.eq.s32.totalorder %s25, 1
      %p195 = scmp.ne.s32.totalorder %s190, %s192
      %p196 = scmp.eq.s32.totalorder %s25, 0
      %p197 = por %p195, %p196
      %p198 = scmp.ne.s32.totalorder %s190, %s192
      %p199 = scmp.eq.s32.totalorder %s30, 1
      %p200 = por %p198, %p199
      %p201 = scmp.ne.s32.totalorder %s192, %s193
      %p202 = scmp.eq.s32.totalorder %s30, 0
      %p203 = por %p201, %p202
      %p204 = scmp.ne.s32.totalorder %s192, %s193
      %p205 = scmp.eq.s32.totalorder %s31, 1
      %p206 = por %p204, %p205
      %p208 = scmp.ne.s32.totalorder %s193, %s207
      %p209 = scmp.eq.s32.totalorder %s31, 0
      %p210 = por %p208, %p209
      %s211 = ssub.s32 %s25, %s32
      %p212 = scmp.eq.s32.totalorder %s211, 0
      %s214 = sadd.s32 %s213, 1
      %s215 = scalar_select %p212, %s213, %s214
      %p218 = pneg %p212
      %p219 = scmp.eq.s32.totalorder %s25, 1
      %p220 = por %p218, %p219
      %p221 = scmp.ne.s32.totalorder %s213, %s216
      %p222 = scmp.eq.s32.totalorder %s25, 0
      %p223 = por %p221, %p222
      %p224 = scmp.ne.s32.totalorder %s213, %s216
      %p225 = scmp.eq.s32.totalorder %s30, 1
      %p226 = por %p224, %p225
      %p227 = scmp.ne.s32.totalorder %s216, %s217
      %p228 = scmp.eq.s32.totalorder %s30, 0
      %p229 = por %p227, %p228
      %p230 = scmp.ne.s32.totalorder %s216, %s217
      %p231 = scmp.eq.s32.totalorder %s31, 1
      %p232 = por %p230, %p231
      %p234 = scmp.ne.s32.totalorder %s217, %s233
      %p235 = scmp.eq.s32.totalorder %s31, 0
      %p236 = por %p234, %p235
      %p237 = scmp.le.s32.totalorder 1, %s25
      %p238 = scmp.lt.s32.totalorder %s25, 3
      %p239 = pnand %p237, %p238
      %p240 = pneg %p239
      // Predicated region
      $region9: #{tpu_custom_call.1} parent=5 // pred_check
        _
      $region10: #{tpu_custom_call.1} parent=5 // pred_check_branch
        %242 = sbr.rel (%p239) target = $region12
      $region11: #{tpu_custom_call.1} parent=5 // pred_region
        %s243 = ssub.s32 %s25, 1
        // Predicated region
        $region13: #{tpu_custom_call.1} parent=11 // pred_check
          %p244 = pneg %p98
        $region14: #{tpu_custom_call.1} parent=11 // pred_check_branch
          %246 = sbr.rel (%p244) target = $region16
        $region15: #{tpu_custom_call.1} parent=11 // pred_region
          %248 = vsyncadd [#allocation7], 0
          %s249 = sshll.u32 %s2, 4
          %s250 = int_to_ptr.hbm [resolvable:$true] %s249
          %s251 = sshll.u32 [#allocation8], 4
          %s252 = int_to_ptr.vmem [resolvable:$true] %s251
          %257 = dma.hbm_to_vmem [thread:$0]  %s250, 512, %s252, [#allocation7], 128, 128, 8
        $region16: #{tpu_custom_call.1} parent=11 // pred_fallthru
          _
        // Predicated region
        $region17: #{tpu_custom_call.1} parent=11 // pred_check
          %p258 = pneg %p119
        $region18: #{tpu_custom_call.1} parent=11 // pred_check_branch
          %260 = sbr.rel (%p258) target = $region20
        $region19: #{tpu_custom_call.1} parent=11 // pred_region
          _
        $region20: #{tpu_custom_call.1} parent=11 // pred_fallthru
          _
        // Predicated region
        $region21: #{tpu_custom_call.1} parent=11 // pred_check
          %p261 = pneg %p140
        $region22: #{tpu_custom_call.1} parent=11 // pred_check_branch
          %263 = sbr.rel (%p261) target = $region24
        $region23: #{tpu_custom_call.1} parent=11 // pred_region
          %265 = vsyncadd [#allocation10], 0
          %s266 = sshll.u32 %s4, 4
          %s267 = int_to_ptr.hbm [resolvable:$true] %s266
          %s268 = sshll.u32 [#allocation9], 4
          %s269 = int_to_ptr.vmem [resolvable:$true] %s268
          %274 = dma.hbm_to_vmem [thread:$0]  %s267, 384, %s269, [#allocation10], 128, 128, 8
        $region24: #{tpu_custom_call.1} parent=11 // pred_fallthru
          _
        // Predicated region
        $region25: #{tpu_custom_call.1} parent=11 // pred_check
          %p275 = pneg %p161
        $region26: #{tpu_custom_call.1} parent=11 // pred_check_branch
          %277 = sbr.rel (%p275) target = $region28
        $region27: #{tpu_custom_call.1} parent=11 // pred_region
          _
        $region28: #{tpu_custom_call.1} parent=11 // pred_fallthru
          _
        // Predicated region
        $region29: #{tpu_custom_call.1} parent=11 // pred_check
          %p278 = pneg %p182
        $region30: #{tpu_custom_call.1} parent=11 // pred_check_branch
          %280 = sbr.rel (%p278) target = $region32
        $region31: #{tpu_custom_call.1} parent=11 // pred_region
          _
        $region32: #{tpu_custom_call.1} parent=11 // pred_fallthru
          _
        // Predicated region
        $region33: #{tpu_custom_call.1} parent=11 // pred_check
          %p281 = pneg %p203
        $region34: #{tpu_custom_call.1} parent=11 // pred_check_branch
          %283 = sbr.rel (%p281) target = $region36
        $region35: #{tpu_custom_call.1} parent=11 // pred_region
          _
        $region36: #{tpu_custom_call.1} parent=11 // pred_fallthru
          _
      $region12: #{tpu_custom_call.1} parent=5 // pred_fallthru
        _
      %p284 = scmp.lt.s32.totalorder %s25, 2
      // Predicated region
      $region37: #{tpu_custom_call.1} parent=5 // pred_check
        %p285 = pneg %p284
      $region38: #{tpu_custom_call.1} parent=5 // pred_check_branch
        %287 = sbr.rel (%p285) target = $region40
      $region39: #{tpu_custom_call.1} parent=5 // pred_region
        // Predicated region
        $region41: #{tpu_custom_call.1} parent=39 // pred_check
          %p288 = pneg %p45
        $region42: #{tpu_custom_call.1} parent=39 // pred_check_branch
          %290 = sbr.rel (%p288) target = $region44
        $region43: #{tpu_custom_call.1} parent=39 // pred_region
          %s291 = sand.u32 %s35, 1
          %s292 = scalar_lea.sflag [#allocation4], %s291
          %s293 = sand.u32 %s35, 1
          %s294 = smul.addr %s293, 8
          %s295 = scalar_lea.vmem [#allocation3], %s294
          %297 = vsyncadd %s292, 0
          %s298 = smul.addr %s25, 8
          %s299 = scalar_lea.hbm %s0, %s298
          %s301 = sshll.u32 %s299, 4
          %s302 = int_to_ptr.hbm [resolvable:$true] %s301
          %s303 = sshll.u32 %s295, 4
          %s304 = int_to_ptr.vmem [resolvable:$true] %s303
          %306 = dma.hbm_to_vmem [thread:$0]  %s302, 128, %s304, %s292
        $region44: #{tpu_custom_call.1} parent=39 // pred_fallthru
          _
        // Predicated region
        $region45: #{tpu_custom_call.1} parent=39 // pred_check
          %p307 = pneg %p71
        $region46: #{tpu_custom_call.1} parent=39 // pred_check_branch
          %309 = sbr.rel (%p307) target = $region48
        $region47: #{tpu_custom_call.1} parent=39 // pred_region
          %s310 = sand.u32 %s25, 1
          %s311 = scalar_lea.sflag [#allocation7], %s310
          %s312 = sand.u32 %s61, 1
          %s313 = smul.addr %s312, 8
          %s314 = scalar_lea.vmem [#allocation6], %s313
          %316 = vsyncadd %s311, 0
          %s317 = smul.addr %s25, 8
          %s318 = scalar_lea.hbm %s1, %s317
          %s320 = sshll.u32 %s318, 4
          %s321 = int_to_ptr.hbm [resolvable:$true] %s320
          %s322 = sshll.u32 %s314, 4
          %s323 = int_to_ptr.vmem [resolvable:$true] %s322
          %325 = dma.hbm_to_vmem [thread:$0]  %s321, 128, %s323, %s311
        $region48: #{tpu_custom_call.1} parent=39 // pred_fallthru
          _
      $region40: #{tpu_custom_call.1} parent=5 // pred_fallthru
        _
      %p326 = scmp.le.s32.totalorder 1, %s25
      %p327 = scmp.lt.s32.totalorder %s25, 3
      %p328 = pnand %p326, %p327
      %p329 = pneg %p328
      // Predicated region
      $region49: #{tpu_custom_call.1} parent=5 // pred_check
        _
      $region50: #{tpu_custom_call.1} parent=5 // pred_check_branch
        %331 = sbr.rel (%p328) target = $region52
      $region51: #{tpu_custom_call.1} parent=5 // pred_region
        %s332 = ssub.s32 %s25, 1
        %s333 = sand.u32 %s38, 1
        %s334 = scalar_lea.sflag [#allocation4], %s333
        %s335 = sand.u32 %s38, 1
        %s336 = smul.addr %s335, 8
        %s337 = scalar_lea.vmem [#allocation3], %s336
        // Predicated region
        $region53: #{tpu_custom_call.1} parent=51 // pred_check
          %p338 = pneg %p51
        $region54: #{tpu_custom_call.1} parent=51 // pred_check_branch
          %340 = sbr.rel (%p338) target = $region56
        $region55: #{tpu_custom_call.1} parent=51 // pred_region
          %342 = dma.done %s334, 128
        $region56: #{tpu_custom_call.1} parent=51 // pred_fallthru
          _
        %s343 = sand.u32 %s30, 1
        %s344 = scalar_lea.sflag [#allocation7], %s343
        %s345 = sand.u32 %s64, 1
        %s346 = smul.addr %s345, 8
        %s347 = scalar_lea.vmem [#allocation6], %s346
        // Predicated region
        $region57: #{tpu_custom_call.1} parent=51 // pred_check
          %p348 = pneg %p77
        $region58: #{tpu_custom_call.1} parent=51 // pred_check_branch
          %350 = sbr.rel (%p348) target = $region60
        $region59: #{tpu_custom_call.1} parent=51 // pred_region
          %352 = dma.done %s344, 128
        $region60: #{tpu_custom_call.1} parent=51 // pred_fallthru
          _
        // Predicated region
        $region61: #{tpu_custom_call.1} parent=51 // pred_check
          %p353 = pneg %p98
        $region62: #{tpu_custom_call.1} parent=51 // pred_check_branch
          %355 = sbr.rel (%p353) target = $region64
        $region63: #{tpu_custom_call.1} parent=51 // pred_region
          %357 = dma.done [#allocation7], 512
        $region64: #{tpu_custom_call.1} parent=51 // pred_fallthru
          _
        // Predicated region
        $region65: #{tpu_custom_call.1} parent=51 // pred_check
          %p358 = pneg %p140
        $region66: #{tpu_custom_call.1} parent=51 // pred_check_branch
          %360 = sbr.rel (%p358) target = $region68
        $region67: #{tpu_custom_call.1} parent=51 // pred_region
          %362 = dma.done [#allocation10], 384
        $region68: #{tpu_custom_call.1} parent=51 // pred_fallthru
          _
        %s363 = sand.u32 %s38, 1
        %s364 = scalar_lea.sflag [#allocation4], %s363
        %s365 = sand.u32 %s38, 1
        %s366 = smul.addr %s365, 8
        %s367 = scalar_lea.vmem [#allocation3], %s366
        %p368 = pneg %p51
        %p369 = pneg %p48
        %s370 = sand.u32 %s30, 1
        %s371 = scalar_lea.sflag [#allocation7], %s370
        %s372 = sand.u32 %s64, 1
        %s373 = smul.addr %s372, 8
        %s374 = scalar_lea.vmem [#allocation6], %s373
        %p375 = pneg %p77
        %p376 = pneg %p74
        %p377 = pneg %p98
        %p378 = pneg %p95
        %p379 = pneg %p119
        %p380 = pneg %p116
        %p381 = pneg %p140
        %p382 = pneg %p137
        %p383 = pneg %p161
        %p384 = pneg %p158
        %p385 = pneg %p182
        %p386 = pneg %p179
        %p387 = pneg %p203
        %p388 = pneg %p200
        %p389 = pneg %p229
        %p390 = pneg %p226
        %s391 = sand.u32 %s216, 1
        %s392 = scalar_lea.sflag [#allocation5], %s391
        %s393 = sand.u32 %s216, 1
        %s394 = smul.addr %s393, 8
        %s395 = scalar_lea.vmem [#allocation11], %s394
        %v396 = vld [vmem:[%s337] sm:$0xff]
        %v397 = vld [vmem:[%s347] sm:$0xff]
        %v398 = vld [vmem:[%s6] sm:$0x1]
        %v400 = vperm.slane %v398, 0
        %v402 = vmul.f32 %v396, %v400
        %vm403 = vcmask 261120
        %v404 = vsel %vm403, %v402, 0.0
        %405 = vadd.xlane.f32.xlu0 %v404
        %v406 = vpop.xlane.xlu0 %405
        %s407 = sld [smem:[#allocation2]]
        %v408 = vstv %s407
        %v409 = vadd.f32 %v406, %v408
        %v410 = vxor.u32 %v409, 2147483648
        %v411 = vmul.f32 %v410, 1.442695
        %v412 = vpow.pop %v411
        %v413 = vadd.f32 %v412, 1.0
        %v414 = vrcp.pop %v413
        %v415 = vmul.f32 %v413, %v414
        %v416 = vsub.f32 1.0, %v415
        %v417 = vmul.f32 %v414, %v416
        %v418 = vadd.f32 %v414, %v417
        %vm419 = vweird.f32 %v413
        %vm420 = vweird.f32 %v414
        %vm421 = vmor %vm419, %vm420
        %v422 = vsel %vm421, %v414, %v418
        %v423 = vand.u32 2147483647, %v413
        %vm424 = vcmp.eq.f32.partialorder %v423, 8.507059e+37
        %v425 = vand.u32 %v413, 2147483648
        %v426 = vor.u32 1.1754944e-38, %v425
        %v427 = vsel %vm424, %v426, %v422
        %v428 = vmul.f32 1.0, %v427
        %v429 = vld [vmem:[#allocation8] sm:$0xff]
        %v430 = vld [vmem:[#allocation8 + $0x8] sm:$0xff]
        %v431 = vld [vmem:[#allocation8 + $0x10] sm:$0xff]
        %v432 = vld [vmem:[#allocation8 + $0x18] sm:$0xff]
        %v433 = vld [vmem:[%s3] sm:$0x1]
        %v435 = vperm.slane %v433, 0
        %v438 = vsel %vm403, %v396, 0
        %440 = vmatpush.msra.mxu0 0.0
        %441 = vmatpush.msra.mxu0 0.0
        %442 = vmatpush.msra.mxu0 0.0
        %443 = vmatpush.msra.mxu0 0.0
        %444 = vmatpush.msra.mxu0 0.0
        %445 = vmatpush.msra.mxu0 0.0
        %446 = vmatpush.msra.mxu0 0.0
        %447 = vmatpush.msra.mxu0 0.0
        %448 = vmatpush.msra.mxu0 0.0
        %449 = vmatpush.msra.mxu0 0.0
        %450 = vmatpush.msra.mxu0 0.0
        %451 = vmatpush.msra.mxu0 0.0
        %452 = vmatpush.msra.mxu0 %v432
        %453 = vmatpush.msra.mxu0 %v431
        %454 = vmatpush.msra.mxu0 %v430
        %455 = vmatpush.msra.mxu0 %v429
        %456 = vmatmul.f32.gmra.mxu0 %v438
        %v457 = vpop.f32.mrf.mxu0
        %v458 = vadd.f32 %v435, %v457
        %459 = vdwg.mxu0
        %v460 = vtanh.pop %v458
        %v461 = vld [vmem:[#allocation9] sm:$0xff]
        %v462 = vld [vmem:[#allocation9 + $0x8] sm:$0xff]
        %v463 = vld [vmem:[#allocation9 + $0x10] sm:$0xff]
        %v464 = vld [vmem:[%s5] sm:$0x1]
        %v466 = vperm.slane %v464, 0
        %vm468 = vcmask 195584
        %v470 = vsel %vm468, %v397, 0
        %472 = vmatpush.msra.mxu0 0.0
        %473 = vmatpush.msra.mxu0 0.0
        %474 = vmatpush.msra.mxu0 0.0
        %475 = vmatpush.msra.mxu0 0.0
        %476 = vmatpush.msra.mxu0 0.0
        %477 = vmatpush.msra.mxu0 0.0
        %478 = vmatpush.msra.mxu0 0.0
        %479 = vmatpush.msra.mxu0 0.0
        %480 = vmatpush.msra.mxu0 0.0
        %481 = vmatpush.msra.mxu0 0.0
        %482 = vmatpush.msra.mxu0 0.0
        %483 = vmatpush.msra.mxu0 0.0
        %484 = vmatpush.msra.mxu0 0.0
        %485 = vmatpush.msra.mxu0 %v463
        %486 = vmatpush.msra.mxu0 %v462
        %487 = vmatpush.msra.mxu0 %v461
        %488 = vmatmul.f32.gmra.mxu0 %v470
        %v489 = vpop.f32.mrf.mxu0
        %v490 = vadd.f32 %v466, %v489
        %491 = vdwg.mxu0
        %v492 = vtanh.pop %v490
        %v493 = vmul.f32 %v428, %v460
        %v494 = vsub.f32 1.0, %v428
        %v495 = vmul.f32 %v494, %v492
        %v496 = vadd.f32 %v493, %v495
        %497 = vst [vmem:[%s395] sm:$0xff] %v496
        %s498 = sand.u32 %s216, 1
        %s499 = scalar_lea.sflag [#allocation5], %s498
        %s500 = sand.u32 %s216, 1
        %s501 = smul.addr %s500, 8
        %s502 = scalar_lea.vmem [#allocation11], %s501
        // Predicated region
        $region69: #{tpu_custom_call.1} parent=51 // pred_check
          %p503 = pneg %p226
        $region70: #{tpu_custom_call.1} parent=51 // pred_check_branch
          %505 = sbr.rel (%p503) target = $region72
        $region71: #{tpu_custom_call.1} parent=51 // pred_region
          %507 = vsyncadd %s499, 0
          %s508 = smul.addr %s30, 8
          %s509 = scalar_lea.hbm %s8, %s508
          %s511 = sshll.u32 %s502, 4
          %s512 = int_to_ptr.vmem [resolvable:$true] %s511
          %s513 = sshll.u32 %s509, 4
          %s514 = int_to_ptr.hbm [resolvable:$true] %s513
          %516 = dma.vmem_to_hbm [thread:$0]  %s512, 128, %s514, %s499
        $region72: #{tpu_custom_call.1} parent=51 // pred_fallthru
          _
      $region52: #{tpu_custom_call.1} parent=5 // pred_fallthru
        _
      %p517 = scmp.le.s32.totalorder 2, %s25
      // Predicated region
      $region73: #{tpu_custom_call.1} parent=5 // pred_check
        %p518 = pneg %p517
      $region74: #{tpu_custom_call.1} parent=5 // pred_check_branch
        %520 = sbr.rel (%p518) target = $region76
      $region75: #{tpu_custom_call.1} parent=5 // pred_region
        %s521 = ssub.s32 %s25, 2
        // Predicated region
        $region77: #{tpu_custom_call.1} parent=75 // pred_check
          %p522 = pneg %p232
        $region78: #{tpu_custom_call.1} parent=75 // pred_check_branch
          %524 = sbr.rel (%p522) target = $region80
        $region79: #{tpu_custom_call.1} parent=75 // pred_region
          %s525 = sand.u32 %s217, 1
          %s526 = scalar_lea.sflag [#allocation5], %s525
          %s527 = sand.u32 %s217, 1
          %s528 = smul.addr %s527, 8
          %s529 = scalar_lea.vmem [#allocation11], %s528
          %531 = dma.done %s526, 128
        $region80: #{tpu_custom_call.1} parent=75 // pred_fallthru
          _
      $region76: #{tpu_custom_call.1} parent=5 // pred_fallthru
        _
    $region6: #{tpu_custom_call.1} parent=1 // loop_footer
      %s29 = sadd.s32 1, %s25
    $region7: #{tpu_custom_call.1} parent=1 // loop_footer_branch
      %24 = sbr.rel target = $region3
    $region8: #{tpu_custom_call.1} parent=1 // loop_exit
      _
    %532 = vsyncpa [#allocation4], 1
    %s533 = scalar_lea.sflag [#allocation4], 1
    %534 = vsyncpa %s533, 1
    %535 = vsyncpa [#allocation7], 1
    %s536 = scalar_lea.sflag [#allocation7], 1
    %537 = vsyncpa %s536, 1
    %538 = vsyncpa [#allocation10], 1
    %539 = vsyncpa [#allocation5], 1
    %s540 = scalar_lea.sflag [#allocation5], 1
    %541 = vsyncpa %s540, 1

</llo_original>
